<compile_context>
chip_gen: v5e
topology: v5e:2x2
jax: 0.10.0
libtpu: 0.0.40
codegen_flags: <defaults>
</compile_context>

<pallas_src>
import functools

import jax
import jax.numpy as jnp
from jax import lax
from jax.experimental import pallas as pl
from jax.experimental.pallas import tpu as pltpu


def detoken_kernel(x_ref, w_ref, b_ref, o_ref, *,
                   batch, seq, num_heads, in_dim, scale, eps):
    head_out = in_dim + 64

    # --- LayerNorm statistics over channels (affine gamma/beta pre-folded into w_ref/b_ref) ---
    x = x_ref[...].astype(jnp.float32)                                  # (B*N, C)
    mean = jnp.mean(x, axis=-1, keepdims=True)
    var = jnp.mean((x - mean) ** 2, axis=-1, keepdims=True)
    xn = (x - mean) * lax.rsqrt(var + eps)

    # --- one fused qkv projection for all batches + heads, bf16 MXU / f32 accumulate ---
    # columns are ordered [h0: q(32)|k(32)|v(in_dim), h1: ...]; bias row = beta @ W^T.
    qkv = jnp.tanh(
        jnp.dot(xn.astype(jnp.bfloat16), w_ref[...],
                preferred_element_type=jnp.float32)
        + b_ref[...])                                                   # (B*N, H*head_out) f32

    for b in range(batch):                                              # tiny B, static unroll
        row0 = b * seq                                                  # seq multiple of 8 -> aligned
        qkv_b = qkv[row0:row0 + seq, :]                                 # (N, H*head_out)
        heads = []
        for h in range(num_heads):                                      # tiny H, static unroll
            base = h * head_out                                         # 32-lane slices never
            q = qkv_b[:, base:base + 32]                                # cross a 128-lane tile
            k = qkv_b[:, base + 32:base + 64]
            v = qkv_b[:, base + 64:base + head_out]                     # (N, in_dim)

            # q . k^T: contract last dims directly, no materialized transpose of k.
            s = lax.dot_general(q, k, (((1,), (1,)), ((), ())),
                                preferred_element_type=jnp.float32)     # (N, N)
            # tanh-bounded logits (|s*scale| <= sqrt(32)) -> safe to skip the row-max shift.
            p = jnp.exp(s * scale)
            denom = jnp.sum(p, axis=-1, keepdims=True)
            attn = p * pl.reciprocal(denom, approx=True)                # EUP vrcp
            out = jnp.dot(attn, v, preferred_element_type=jnp.float32)  # (N, in_dim)
            heads.append(v + out)                                       # residual with v

        # final (N, H*in_dim) layout stored directly -> no post-kernel transpose
        o_ref[row0:row0 + seq, :] = jnp.concatenate(heads, axis=-1).astype(o_ref.dtype)


def prepare_qkv_params(w_qkv, gamma, beta):
    """One-time parameter prep (module-build time, out of the hot path).

    torch Linear computes y = x @ W.T with rows already ordered
    [head0: q(32)|k(32)|v(in_dim), head1: ...].  The LayerNorm affine is folded in exactly:
        (xn*gamma + beta) @ W.T = xn @ (diag(gamma) @ W.T) + beta @ W.T
    Returns (bf16 fused weight of shape (C, H*(in_dim+64)), f32 bias row (1, H*(in_dim+64))).
    """
    w_t = jnp.transpose(w_qkv).astype(jnp.float32)                      # (C, H*head_out)
    w_scaled = (gamma.astype(jnp.float32)[:, None] * w_t).astype(jnp.bfloat16)
    bias = (beta.astype(jnp.float32) @ w_t).reshape(1, -1)              # stays f32 (tiny)
    return w_scaled, bias


def detoken_transformer_tanh(x, w_fused, bias, *, num_heads, in_dim, dim, eps=1e-5):
    B, N, C = x.shape
    assert C == dim
    # the module hard-codes q/k widths of 32; the kernel slices assume dim//num_heads == 32
    assert dim // num_heads == 32, "q/k slice width is hard-coded to 32 lanes"
    head_out = in_dim + 64
    assert w_fused.shape == (C, head_out * num_heads)
    assert bias.shape == (1, head_out * num_heads)

    scale = (dim // num_heads) ** (-0.5)
    rows = B * N

    out_flat = pl.pallas_call(
        functools.partial(detoken_kernel, batch=B, seq=N, num_heads=num_heads,
                          in_dim=in_dim, scale=scale, eps=eps),
        out_shape=jax.ShapeDtypeStruct((rows, num_heads * in_dim), x.dtype),
        grid_spec=pltpu.PrefetchScalarGridSpec(
            num_scalar_prefetch=0,
            grid=(1,),                                   # single step: whole problem in one shot
            in_specs=[
                pl.BlockSpec((rows, C), lambda i: (0, 0)),                      # x (flattened)
                pl.BlockSpec((C, head_out * num_heads), lambda i: (0, 0)),      # fused bf16 W
                pl.BlockSpec((1, head_out * num_heads), lambda i: (0, 0)),      # folded bias
            ],
            out_specs=pl.BlockSpec((rows, num_heads * in_dim), lambda i: (0, 0)),
        ),
        compiler_params=pltpu.CompilerParams(
            dimension_semantics=("arbitrary",)),
    )(x.reshape(rows, C), w_fused, bias)

    return out_flat.reshape(B, N, num_heads * in_dim)     # free reshape (contiguous)


def reference(x, w_qkv, gamma, beta, *, num_heads, in_dim, dim):
    B, N, C = x.shape
    mean = x.mean(-1, keepdims=True)
    var = ((x - mean) ** 2).mean(-1, keepdims=True)
    xn = (x - mean) / jnp.sqrt(var + 1e-5) * gamma + beta
    qkv = jnp.tanh(xn @ w_qkv.T).reshape(B, N, num_heads, in_dim + 64).transpose(0, 2, 1, 3)
    q, k, v = qkv[..., 0:32], qkv[..., 32:64], qkv[..., 64:]
    scale = (dim // num_heads) ** (-0.5)
    attn = jax.nn.softmax((q @ jnp.swapaxes(k, -2, -1)) * scale, axis=-1)
    out = (attn @ v).transpose(0, 2, 1, 3).reshape(B, N, num_heads * in_dim)
    return v.transpose(0, 2, 1, 3).reshape(B, N, num_heads * in_dim) + out


if __name__ == "__main__":
    # Small shapes consistent with the module: dim=64, in_dim=32, num_heads=2, B=2, N=16.
    B, N, dim, in_dim, num_heads = 2, 16, 64, 32, 2
    head_out = in_dim + 64

    key = jax.random.PRNGKey(0)
    kx, kw, kg, kb = jax.random.split(key, 4)
    x = jax.random.normal(kx, (B, N, dim), dtype=jnp.float32)
    w_qkv = jax.random.normal(kw, (head_out * num_heads, dim), dtype=jnp.float32) * 0.05
    gamma = 1.0 + 0.1 * jax.random.normal(kg, (dim,), dtype=jnp.float32)
    beta = 0.1 * jax.random.normal(kb, (dim,), dtype=jnp.float32)

    # one-time parameter preprocessing (LayerNorm affine folded in, bf16 weight slab)
    w_fused, bias = prepare_qkv_params(w_qkv, gamma, beta)
    w_fused = jax.block_until_ready(w_fused)

    y = detoken_transformer_tanh(x, w_fused, bias,
                                 num_heads=num_heads, in_dim=in_dim, dim=dim)
    y = jax.block_until_ready(y)

    y_ref = reference(x, w_qkv, gamma, beta,
                      num_heads=num_heads, in_dim=in_dim, dim=dim)
    assert y.shape == (B, N, num_heads * in_dim)
    # tolerance loosened for the bf16 weight/activation matmul path (f32 reference).
    assert jnp.allclose(y, y_ref, atol=1e-2, rtol=1e-2), "mismatch vs pure-JAX reference"

    print("KERNEL_OK")
</pallas_src>

<mosaic_0001>
module attributes {stable_mosaic.version = 11 : i64} {
  func.func @detoken_kernel(%arg0: i32, %arg1: memref<32x64xf32, #tpu.memory_space<vmem>>, %arg2: memref<64x192xbf16, #tpu.memory_space<vmem>>, %arg3: memref<1x192xf32, #tpu.memory_space<vmem>>, %arg4: memref<32x64xf32, #tpu.memory_space<vmem>>) attributes {dimension_semantics = [#tpu.dimension_semantics<arbitrary>], iteration_bounds = array<i64: 1>, scalar_prefetch = 0 : i64, scratch_operands = 0 : i64, tpu.core_type = #tpu.core_type<tc>, window_params = [{pipeline_mode = #tpu.pipeline_mode<synchronous>, transform_indices = @transform_0, window_bounds = array<i64: 32, 64>}, {pipeline_mode = #tpu.pipeline_mode<synchronous>, transform_indices = @transform_1, window_bounds = array<i64: 64, 192>}, {pipeline_mode = #tpu.pipeline_mode<synchronous>, transform_indices = @transform_2, window_bounds = array<i64: 1, 192>}, {pipeline_mode = #tpu.pipeline_mode<synchronous>, transform_indices = @transform_3, window_bounds = array<i64: 32, 64>}]} {
    %c0 = arith.constant 0 : index
    %c0_0 = arith.constant 0 : index
    %0 = vector.load %arg1[%c0, %c0_0] : memref<32x64xf32, #tpu.memory_space<vmem>>, vector<32x64xf32>
    %cst = arith.constant dense<0.000000e+00> : vector<32xf32>
    %1 = vector.multi_reduction <add>, %0, %cst [1] : vector<32x64xf32> to vector<32xf32>
    %2 = vector.shape_cast %1 : vector<32xf32> to vector<32x1xf32>
    %cst_1 = arith.constant 6.400000e+01 : f32
    %3 = vector.broadcast %cst_1 : f32 to vector<32x1xf32>
    %4 = arith.divf %2, %3 : vector<32x1xf32>
    %5 = vector.broadcast %4 : vector<32x1xf32> to vector<32x64xf32>
    %6 = arith.subf %0, %5 : vector<32x64xf32>
    %7 = arith.mulf %6, %6 : vector<32x64xf32>
    %cst_2 = arith.constant dense<0.000000e+00> : vector<32xf32>
    %8 = vector.multi_reduction <add>, %7, %cst_2 [1] : vector<32x64xf32> to vector<32xf32>
    %9 = vector.shape_cast %8 : vector<32xf32> to vector<32x1xf32>
    %cst_3 = arith.constant 6.400000e+01 : f32
    %10 = vector.broadcast %cst_3 : f32 to vector<32x1xf32>
    %11 = arith.divf %9, %10 : vector<32x1xf32>
    %12 = vector.broadcast %4 : vector<32x1xf32> to vector<32x64xf32>
    %13 = arith.subf %0, %12 : vector<32x64xf32>
    %cst_4 = arith.constant 9.99999974E-6 : f32
    %14 = vector.broadcast %cst_4 : f32 to vector<32x1xf32>
    %15 = arith.addf %11, %14 : vector<32x1xf32>
    %16 = math.rsqrt %15 : vector<32x1xf32>
    %17 = vector.broadcast %16 : vector<32x1xf32> to vector<32x64xf32>
    %18 = arith.mulf %13, %17 : vector<32x64xf32>
    %19 = arith.truncf %18 : vector<32x64xf32> to vector<32x64xbf16>
    %c0_5 = arith.constant 0 : index
    %c0_6 = arith.constant 0 : index
    %20 = vector.load %arg2[%c0_5, %c0_6] : memref<64x192xbf16, #tpu.memory_space<vmem>>, vector<64x192xbf16>
    %cst_7 = arith.constant dense<0.000000e+00> : vector<32x192xf32>
    %21 = tpu.matmul %19, %20, %cst_7 {dimension_numbers = #tpu.dot_dimension_numbers<[1], [0], [0], [1], [0, 0, 1, 1], [], []>} : vector<32x64xbf16>, vector<64x192xbf16>, vector<32x192xf32> -> vector<32x192xf32>
    %c0_8 = arith.constant 0 : index
    %c0_9 = arith.constant 0 : index
    %22 = vector.load %arg3[%c0_8, %c0_9] : memref<1x192xf32, #tpu.memory_space<vmem>>, vector<1x192xf32>
    %23 = vector.broadcast %22 : vector<1x192xf32> to vector<32x192xf32>
    %24 = arith.addf %21, %23 : vector<32x192xf32>
    %25 = math.tanh %24 : vector<32x192xf32>
    %26 = vector.extract_strided_slice %25 {offsets = [0, 0], sizes = [16, 192], strides = [1, 1]} : vector<32x192xf32> to vector<16x192xf32>
    %27 = vector.extract_strided_slice %26 {offsets = [0, 0], sizes = [16, 32], strides = [1, 1]} : vector<16x192xf32> to vector<16x32xf32>
    %28 = vector.extract_strided_slice %26 {offsets = [0, 32], sizes = [16, 32], strides = [1, 1]} : vector<16x192xf32> to vector<16x32xf32>
    %29 = vector.extract_strided_slice %26 {offsets = [0, 64], sizes = [16, 32], strides = [1, 1]} : vector<16x192xf32> to vector<16x32xf32>
    %cst_10 = arith.constant dense<0.000000e+00> : vector<16x16xf32>
    %30 = tpu.matmul %27, %28, %cst_10 {dimension_numbers = #tpu.dot_dimension_numbers<[1], [1], [0], [0], [0, 0, 1, 0], [], []>} : vector<16x32xf32>, vector<16x32xf32>, vector<16x16xf32> -> vector<16x16xf32>
    %cst_11 = arith.constant 0.176776692 : f32
    %31 = vector.broadcast %cst_11 : f32 to vector<16x16xf32>
    %32 = arith.mulf %30, %31 : vector<16x16xf32>
    %33 = math.exp %32 : vector<16x16xf32>
    %cst_12 = arith.constant dense<0.000000e+00> : vector<16xf32>
    %34 = vector.multi_reduction <add>, %33, %cst_12 [1] : vector<16x16xf32> to vector<16xf32>
    %35 = vector.shape_cast %34 : vector<16xf32> to vector<16x1xf32>
    %36 = tpu.reciprocal %35 {approx = true} : vector<16x1xf32> -> vector<16x1xf32>
    %37 = vector.broadcast %36 : vector<16x1xf32> to vector<16x16xf32>
    %38 = arith.mulf %33, %37 : vector<16x16xf32>
    %cst_13 = arith.constant dense<0.000000e+00> : vector<16x32xf32>
    %39 = tpu.matmul %38, %29, %cst_13 {dimension_numbers = #tpu.dot_dimension_numbers<[1], [0], [0], [1], [0, 0, 1, 1], [], []>} : vector<16x16xf32>, vector<16x32xf32>, vector<16x32xf32> -> vector<16x32xf32>
    %40 = arith.addf %29, %39 : vector<16x32xf32>
    %41 = vector.extract_strided_slice %26 {offsets = [0, 96], sizes = [16, 32], strides = [1, 1]} : vector<16x192xf32> to vector<16x32xf32>
    %42 = vector.extract_strided_slice %26 {offsets = [0, 128], sizes = [16, 32], strides = [1, 1]} : vector<16x192xf32> to vector<16x32xf32>
    %43 = vector.extract_strided_slice %26 {offsets = [0, 160], sizes = [16, 32], strides = [1, 1]} : vector<16x192xf32> to vector<16x32xf32>
    %cst_14 = arith.constant dense<0.000000e+00> : vector<16x16xf32>
    %44 = tpu.matmul %41, %42, %cst_14 {dimension_numbers = #tpu.dot_dimension_numbers<[1], [1], [0], [0], [0, 0, 1, 0], [], []>} : vector<16x32xf32>, vector<16x32xf32>, vector<16x16xf32> -> vector<16x16xf32>
    %cst_15 = arith.constant 0.176776692 : f32
    %45 = vector.broadcast %cst_15 : f32 to vector<16x16xf32>
    %46 = arith.mulf %44, %45 : vector<16x16xf32>
    %47 = math.exp %46 : vector<16x16xf32>
    %cst_16 = arith.constant dense<0.000000e+00> : vector<16xf32>
    %48 = vector.multi_reduction <add>, %47, %cst_16 [1] : vector<16x16xf32> to vector<16xf32>
    %49 = vector.shape_cast %48 : vector<16xf32> to vector<16x1xf32>
    %50 = tpu.reciprocal %49 {approx = true} : vector<16x1xf32> -> vector<16x1xf32>
    %51 = vector.broadcast %50 : vector<16x1xf32> to vector<16x16xf32>
    %52 = arith.mulf %47, %51 : vector<16x16xf32>
    %cst_17 = arith.constant dense<0.000000e+00> : vector<16x32xf32>
    %53 = tpu.matmul %52, %43, %cst_17 {dimension_numbers = #tpu.dot_dimension_numbers<[1], [0], [0], [1], [0, 0, 1, 1], [], []>} : vector<16x16xf32>, vector<16x32xf32>, vector<16x32xf32> -> vector<16x32xf32>
    %54 = arith.addf %43, %53 : vector<16x32xf32>
    %55 = tpu.concatenate %40, %54 in 1 : vector<16x32xf32>, vector<16x32xf32> -> vector<16x64xf32>
    %c0_18 = arith.constant 0 : index
    %c0_19 = arith.constant 0 : index
    %56 = vector.load %arg4[%c0_18, %c0_19] : memref<32x64xf32, #tpu.memory_space<vmem>>, vector<16x64xf32>
    tpu.vector_store %arg4[%c0_18, %c0_19], %55 {strides = array<i32>} : memref<32x64xf32, #tpu.memory_space<vmem>>, vector<16x64xf32>,
    %57 = vector.extract_strided_slice %25 {offsets = [16, 0], sizes = [16, 192], strides = [1, 1]} : vector<32x192xf32> to vector<16x192xf32>
    %58 = vector.extract_strided_slice %57 {offsets = [0, 0], sizes = [16, 32], strides = [1, 1]} : vector<16x192xf32> to vector<16x32xf32>
    %59 = vector.extract_strided_slice %57 {offsets = [0, 32], sizes = [16, 32], strides = [1, 1]} : vector<16x192xf32> to vector<16x32xf32>
    %60 = vector.extract_strided_slice %57 {offsets = [0, 64], sizes = [16, 32], strides = [1, 1]} : vector<16x192xf32> to vector<16x32xf32>
    %cst_20 = arith.constant dense<0.000000e+00> : vector<16x16xf32>
    %61 = tpu.matmul %58, %59, %cst_20 {dimension_numbers = #tpu.dot_dimension_numbers<[1], [1], [0], [0], [0, 0, 1, 0], [], []>} : vector<16x32xf32>, vector<16x32xf32>, vector<16x16xf32> -> vector<16x16xf32>
    %cst_21 = arith.constant 0.176776692 : f32
    %62 = vector.broadcast %cst_21 : f32 to vector<16x16xf32>
    %63 = arith.mulf %61, %62 : vector<16x16xf32>
    %64 = math.exp %63 : vector<16x16xf32>
    %cst_22 = arith.constant dense<0.000000e+00> : vector<16xf32>
    %65 = vector.multi_reduction <add>, %64, %cst_22 [1] : vector<16x16xf32> to vector<16xf32>
    %66 = vector.shape_cast %65 : vector<16xf32> to vector<16x1xf32>
    %67 = tpu.reciprocal %66 {approx = true} : vector<16x1xf32> -> vector<16x1xf32>
    %68 = vector.broadcast %67 : vector<16x1xf32> to vector<16x16xf32>
    %69 = arith.mulf %64, %68 : vector<16x16xf32>
    %cst_23 = arith.constant dense<0.000000e+00> : vector<16x32xf32>
    %70 = tpu.matmul %69, %60, %cst_23 {dimension_numbers = #tpu.dot_dimension_numbers<[1], [0], [0], [1], [0, 0, 1, 1], [], []>} : vector<16x16xf32>, vector<16x32xf32>, vector<16x32xf32> -> vector<16x32xf32>
    %71 = arith.addf %60, %70 : vector<16x32xf32>
    %72 = vector.extract_strided_slice %57 {offsets = [0, 96], sizes = [16, 32], strides = [1, 1]} : vector<16x192xf32> to vector<16x32xf32>
    %73 = vector.extract_strided_slice %57 {offsets = [0, 128], sizes = [16, 32], strides = [1, 1]} : vector<16x192xf32> to vector<16x32xf32>
    %74 = vector.extract_strided_slice %57 {offsets = [0, 160], sizes = [16, 32], strides = [1, 1]} : vector<16x192xf32> to vector<16x32xf32>
    %cst_24 = arith.constant dense<0.000000e+00> : vector<16x16xf32>
    %75 = tpu.matmul %72, %73, %cst_24 {dimension_numbers = #tpu.dot_dimension_numbers<[1], [1], [0], [0], [0, 0, 1, 0], [], []>} : vector<16x32xf32>, vector<16x32xf32>, vector<16x16xf32> -> vector<16x16xf32>
    %cst_25 = arith.constant 0.176776692 : f32
    %76 = vector.broadcast %cst_25 : f32 to vector<16x16xf32>
    %77 = arith.mulf %75, %76 : vector<16x16xf32>
    %78 = math.exp %77 : vector<16x16xf32>
    %cst_26 = arith.constant dense<0.000000e+00> : vector<16xf32>
    %79 = vector.multi_reduction <add>, %78, %cst_26 [1] : vector<16x16xf32> to vector<16xf32>
    %80 = vector.shape_cast %79 : vector<16xf32> to vector<16x1xf32>
    %81 = tpu.reciprocal %80 {approx = true} : vector<16x1xf32> -> vector<16x1xf32>
    %82 = vector.broadcast %81 : vector<16x1xf32> to vector<16x16xf32>
    %83 = arith.mulf %78, %82 : vector<16x16xf32>
    %cst_27 = arith.constant dense<0.000000e+00> : vector<16x32xf32>
    %84 = tpu.matmul %83, %74, %cst_27 {dimension_numbers = #tpu.dot_dimension_numbers<[1], [0], [0], [1], [0, 0, 1, 1], [], []>} : vector<16x16xf32>, vector<16x32xf32>, vector<16x32xf32> -> vector<16x32xf32>
    %85 = arith.addf %74, %84 : vector<16x32xf32>
    %86 = tpu.concatenate %71, %85 in 1 : vector<16x32xf32>, vector<16x32xf32> -> vector<16x64xf32>
    %c16 = arith.constant 16 : index
    %c0_28 = arith.constant 0 : index
    %87 = vector.load %arg4[%c16, %c0_28] : memref<32x64xf32, #tpu.memory_space<vmem>>, vector<16x64xf32>
    tpu.vector_store %arg4[%c16, %c0_28], %86 {strides = array<i32>} : memref<32x64xf32, #tpu.memory_space<vmem>>, vector<16x64xf32>,
    return
  }
  func.func @transform_0(%arg0: i32) -> (i32, i32) {
    %c0_i32 = arith.constant 0 : i32
    %c0_i32_0 = arith.constant 0 : i32
    %c0_i32_1 = arith.constant 0 : i32
    return %c0_i32, %c0_i32_0 : i32, i32
  }
  func.func @transform_1(%arg0: i32) -> (i32, i32) {
    %c0_i32 = arith.constant 0 : i32
    %c0_i32_0 = arith.constant 0 : i32
    %c0_i32_1 = arith.constant 0 : i32
    return %c0_i32, %c0_i32_0 : i32, i32
  }
  func.func @transform_2(%arg0: i32) -> (i32, i32) {
    %c0_i32 = arith.constant 0 : i32
    %c0_i32_0 = arith.constant 0 : i32
    %c0_i32_1 = arith.constant 0 : i32
    return %c0_i32, %c0_i32_0 : i32, i32
  }
  func.func @transform_3(%arg0: i32) -> (i32, i32) {
    %c0_i32 = arith.constant 0 : i32
    %c0_i32_0 = arith.constant 0 : i32
    %c0_i32_1 = arith.constant 0 : i32
    return %c0_i32, %c0_i32_0 : i32, i32
  }
}

</mosaic_0001>

<llo_original>
// kernel: tpu_custom_call.1
$region0: #{tpu_custom_call.1}
  #allocation0 [shape = 'u32[]', space=smem, size = 0x4, offset = 0x4, fixed_abs, tag = 'smem constant byte address 0x4 - core index']
  #allocation1 [shape = 'u32[72,128]{1,0:T(1,128)}', space=vmem, size = 0x9000, scoped, tag = 'internal scratch']
  %s0 = inlined_call_operand.hbm [shape: f32[32,64], index: 0, kind: input, shape index: {}]
  %s1 = inlined_call_operand.hbm [shape: bf16[64,192], index: 1, kind: input, shape index: {}]
  %s2 = inlined_call_operand.hbm [shape: f32[1,192], index: 2, kind: input, shape index: {}]
  %s3 = inlined_call_operand.hbm [shape: f32[32,64], index: 3, kind: output, shape index: {}]
  %s4 = sld [smem:[#allocation0]]
  $region34: #{tpu_custom_call.1} parent=0
    _
  %s6 = ssub.s32 1, %s4
  %s7 = scalar_select 0, %s6, %s4
  $region1: #{tpu_custom_call.1} parent=0
    #allocation2 [shape = 'u8[16384]{0}', space=vmem, size = 0x4000, scoped, tag = 'input window, operand 0, single buffered']
    #allocation3 [shape = 's32[1]{0}', space=sflag, size = 0x4, scoped, tag = 'scoped memory for tpu_custom_call.1']
    #allocation4 [shape = 's32[1]{0}', space=sflag, size = 0x4, scoped, tag = 'scoped memory for tpu_custom_call.1']
    #allocation5 [shape = 'u8[32768]{0}', space=vmem, size = 0x8000, scoped, tag = 'input window, operand 1, single buffered']
    #allocation6 [shape = 's32[1]{0}', space=sflag, size = 0x4, scoped, tag = 'scoped memory for tpu_custom_call.1']
    #allocation7 [shape = 'u8[1024]{0}', space=vmem, size = 0x400, scoped, tag = 'input window, operand 2, single buffered']
    #allocation8 [shape = 'u8[16384]{0}', space=vmem, size = 0x4000, scoped, tag = 'output window, operand 0, single buffered']
    %8 = vsyncpa [#allocation3], 0
    %9 = vsyncpa [#allocation6], 0
    %10 = vsyncpa [#allocation4], 0
    // Predicated region
    $region2: #{tpu_custom_call.1} parent=1 // pred_check
      _
    $region3: #{tpu_custom_call.1} parent=1 // pred_check_branch
      %12 = sbr.rel (0) target = $region5
    $region4: #{tpu_custom_call.1} parent=1 // pred_region
      %14 = vsyncadd [#allocation3], 0
      %s15 = sshll.u32 %s0, 4
      %s16 = int_to_ptr.hbm [resolvable:$true] %s15
      %s17 = sshll.u32 [#allocation2], 4
      %s18 = int_to_ptr.vmem [resolvable:$true] %s17
      %23 = dma.hbm_to_vmem [thread:$0]  %s16, 512, %s18, [#allocation3], 128, 128, 8
    $region5: #{tpu_custom_call.1} parent=1 // pred_fallthru
      _
    // Predicated region
    $region6: #{tpu_custom_call.1} parent=1 // pred_check
      _
    $region7: #{tpu_custom_call.1} parent=1 // pred_check_branch
      %25 = sbr.rel (0) target = $region9
    $region8: #{tpu_custom_call.1} parent=1 // pred_region
      %27 = vsyncadd [#allocation6], 0
      %s28 = sshll.u32 %s1, 4
      %s29 = int_to_ptr.hbm [resolvable:$true] %s28
      %s30 = sshll.u32 [#allocation5], 4
      %s31 = int_to_ptr.vmem [resolvable:$true] %s30
      %36 = dma.hbm_to_vmem [thread:$0]  %s29, 1024, %s31, [#allocation6], 128, 128, 8
    $region9: #{tpu_custom_call.1} parent=1 // pred_fallthru
      _
    // Predicated region
    $region10: #{tpu_custom_call.1} parent=1 // pred_check
      _
    $region11: #{tpu_custom_call.1} parent=1 // pred_check_branch
      %38 = sbr.rel (0) target = $region13
    $region12: #{tpu_custom_call.1} parent=1 // pred_region
      %40 = vsyncadd [#allocation6], 0
      %s42 = sshll.u32 %s2, 4
      %s43 = int_to_ptr.hbm [resolvable:$true] %s42
      %s44 = sshll.u32 [#allocation7], 4
      %s45 = int_to_ptr.vmem [resolvable:$true] %s44
      %47 = dma.hbm_to_vmem [thread:$0]  %s43, 32, %s45, [#allocation6]
    $region13: #{tpu_custom_call.1} parent=1 // pred_fallthru
      _
    // Predicated region
    $region14: #{tpu_custom_call.1} parent=1 // pred_check
      _
    $region15: #{tpu_custom_call.1} parent=1 // pred_check_branch
      %49 = sbr.rel (0) target = $region17
    $region16: #{tpu_custom_call.1} parent=1 // pred_region
      %51 = dma.done [#allocation3], 512
    $region17: #{tpu_custom_call.1} parent=1 // pred_fallthru
      _
    // Predicated region
    $region18: #{tpu_custom_call.1} parent=1 // pred_check
      _
    $region19: #{tpu_custom_call.1} parent=1 // pred_check_branch
      %53 = sbr.rel (0) target = $region21
    $region20: #{tpu_custom_call.1} parent=1 // pred_region
      %55 = dma.done [#allocation6], 1024
    $region21: #{tpu_custom_call.1} parent=1 // pred_fallthru
      _
    // Predicated region
    $region22: #{tpu_custom_call.1} parent=1 // pred_check
      _
    $region23: #{tpu_custom_call.1} parent=1 // pred_check_branch
      %57 = sbr.rel (0) target = $region25
    $region24: #{tpu_custom_call.1} parent=1 // pred_region
      %59 = dma.done [#allocation6], 32
    $region25: #{tpu_custom_call.1} parent=1 // pred_fallthru
      _
    %v61 = vld [vmem:[#allocation2] sm:$0xff]
    %v62 = vld [vmem:[#allocation2 + $0x8] sm:$0xff]
    %v63 = vld [vmem:[#allocation2 + $0x10] sm:$0xff]
    %v64 = vld [vmem:[#allocation2 + $0x18] sm:$0xff]
    %vm65 = vcmask 523264
    %v66 = vsel %vm65, %v61, 0.0
    %67 = vadd.xlane.f32.xlu0 %v66
    %v68 = vpop.xlane.xlu0 %67
    %v69 = vsel %vm65, %v62, 0.0
    %70 = vadd.xlane.f32.xlu0 %v69
    %v71 = vpop.xlane.xlu0 %70
    %v72 = vsel %vm65, %v63, 0.0
    %73 = vadd.xlane.f32.xlu0 %v72
    %v74 = vpop.xlane.xlu0 %73
    %v75 = vsel %vm65, %v64, 0.0
    %76 = vadd.xlane.f32.xlu0 %v75
    %v77 = vpop.xlane.xlu0 %76
    %v78 = vrcp.pop 64.0
    %v79 = vmul.f32 64.0, %v78
    %v80 = vsub.f32 1.0, %v79
    %v81 = vmul.f32 %v78, %v80
    %v82 = vadd.f32 %v78, %v81
    %vm83 = vweird.f32 %v78
    %v84 = vsel %vm83, %v78, %v82
    %v85 = vmul.f32 %v68, %v84
    %v86 = vmul.f32 %v71, %v84
    %v87 = vmul.f32 %v74, %v84
    %v88 = vmul.f32 %v77, %v84
    %v89 = vsub.f32 %v61, %v85
    %v90 = vsub.f32 %v62, %v86
    %v91 = vsub.f32 %v63, %v87
    %v92 = vsub.f32 %v64, %v88
    %v93 = vmul.f32 %v89, %v89
    %v94 = vmul.f32 %v90, %v90
    %v95 = vmul.f32 %v91, %v91
    %v96 = vmul.f32 %v92, %v92
    %v97 = vsel %vm65, %v93, 0.0
    %98 = vadd.xlane.f32.xlu0 %v97
    %v99 = vpop.xlane.xlu0 %98
    %v100 = vsel %vm65, %v94, 0.0
    %101 = vadd.xlane.f32.xlu0 %v100
    %v102 = vpop.xlane.xlu0 %101
    %v103 = vsel %vm65, %v95, 0.0
    %104 = vadd.xlane.f32.xlu0 %v103
    %v105 = vpop.xlane.xlu0 %104
    %v106 = vsel %vm65, %v96, 0.0
    %107 = vadd.xlane.f32.xlu0 %v106
    %v108 = vpop.xlane.xlu0 %107
    %v109 = vmul.f32 %v99, %v84
    %v110 = vmul.f32 %v102, %v84
    %v111 = vmul.f32 %v105, %v84
    %v112 = vmul.f32 %v108, %v84
    %v113 = vadd.f32 %v109, 1e-05
    %v114 = vadd.f32 %v110, 1e-05
    %v115 = vadd.f32 %v111, 1e-05
    %v116 = vadd.f32 %v112, 1e-05
    %v117 = vrsqrt.pop %v113
    %v118 = vmul.f32 %v117, %v113
    %v119 = vmul.f32 %v118, %v117
    %v120 = vmul.f32 0.5, %v119
    %v121 = vsub.f32 1.5, %v120
    %v122 = vmul.f32 %v117, %v121
    %vm123 = vweird.f32 %v113
    %vm124 = vweird.f32 %v117
    %vm125 = vmor %vm123, %vm124
    %v126 = vsel %vm125, %v117, %v122
    %v127 = vrsqrt.pop %v114
    %v128 = vmul.f32 %v127, %v114
    %v129 = vmul.f32 %v128, %v127
    %v130 = vmul.f32 0.5, %v129
    %v131 = vsub.f32 1.5, %v130
    %v132 = vmul.f32 %v127, %v131
    %vm133 = vweird.f32 %v114
    %vm134 = vweird.f32 %v127
    %vm135 = vmor %vm133, %vm134
    %v136 = vsel %vm135, %v127, %v132
    %v137 = vrsqrt.pop %v115
    %v138 = vmul.f32 %v137, %v115
    %v139 = vmul.f32 %v138, %v137
    %v140 = vmul.f32 0.5, %v139
    %v141 = vsub.f32 1.5, %v140
    %v142 = vmul.f32 %v137, %v141
    %vm143 = vweird.f32 %v115
    %vm144 = vweird.f32 %v137
    %vm145 = vmor %vm143, %vm144
    %v146 = vsel %vm145, %v137, %v142
    %v147 = vrsqrt.pop %v116
    %v148 = vmul.f32 %v147, %v116
    %v149 = vmul.f32 %v148, %v147
    %v150 = vmul.f32 0.5, %v149
    %v151 = vsub.f32 1.5, %v150
    %v152 = vmul.f32 %v147, %v151
    %vm153 = vweird.f32 %v116
    %vm154 = vweird.f32 %v147
    %vm155 = vmor %vm153, %vm154
    %v156 = vsel %vm155, %v147, %v152
    %v157 = vmul.f32 %v89, %v126
    %v158 = vmul.f32 %v90, %v136
    %v159 = vmul.f32 %v91, %v146
    %v160 = vmul.f32 %v92, %v156
    %v161 = vpack.c.bf16 %v158, %v157
    %v162 = vpack.c.bf16 %v160, %v159
    %v163 = vld [vmem:[#allocation5] sm:$0xff]
    %v164 = vld [vmem:[#allocation5 + $0x8] sm:$0xff]
    %v165 = vld [vmem:[#allocation5 + $0x10] sm:$0xff]
    %v166 = vld [vmem:[#allocation5 + $0x18] sm:$0xff]
    %v167 = vld [vmem:[#allocation5 + $0x20] sm:$0xff]
    %v168 = vld [vmem:[#allocation5 + $0x28] sm:$0xff]
    %v169 = vld [vmem:[#allocation5 + $0x30] sm:$0xff]
    %v170 = vld [vmem:[#allocation5 + $0x38] sm:$0xff]
    %v171 = vld [vmem:[#allocation7] sm:$0x3]
    %v173 = vperm.slane %v171, 0
    %v174 = vperm.slane %v171, 1
    %v185 = vunpack.c.l.b16 %v163
    %v186 = vunpack.c.h.b16 %v163
    %v187 = vunpack.c.l.b16 %v164
    %v188 = vunpack.c.h.b16 %v164
    %v189 = vunpack.c.l.b16 %v165
    %v190 = vunpack.c.h.b16 %v165
    %v191 = vunpack.c.l.b16 %v166
    %v192 = vunpack.c.h.b16 %v166
    %v193 = vunpack.c.l.b16 %v167
    %v194 = vunpack.c.h.b16 %v167
    %v195 = vunpack.c.l.b16 %v168
    %v196 = vunpack.c.h.b16 %v168
    %v197 = vunpack.c.l.b16 %v169
    %v198 = vunpack.c.h.b16 %v169
    %v199 = vunpack.c.l.b16 %v170
    %v200 = vunpack.c.h.b16 %v170
    %v201 = vpack.c.b16 %v187, %v185
    %v202 = vpack.c.b16 %v188, %v186
    %v203 = vpack.c.b16 %v191, %v189
    %v204 = vpack.c.b16 %v192, %v190
    %v205 = vpack.c.b16 %v195, %v193
    %v206 = vpack.c.b16 %v196, %v194
    %v207 = vpack.c.b16 %v199, %v197
    %v208 = vpack.c.b16 %v200, %v198
    %v218 = vsel %vm65, %v161, 0
    %v221 = vsel %vm65, %v162, 0
    %223 = vmatpush.bf16.msra.mxu0 0
    %224 = vmatpush.bf16.msra.mxu0 0
    %225 = vmatpush.bf16.msra.mxu0 0
    %226 = vmatpush.bf16.msra.mxu0 0
    %227 = vmatpush.bf16.msra.mxu0 %v207
    %228 = vmatpush.bf16.msra.mxu0 %v205
    %229 = vmatpush.bf16.msra.mxu0 %v203
    %230 = vmatpush.bf16.msra.mxu0 %v201
    %231 = vmatmul.bf16.gmra.mxu0 %v218
    %v232 = vpop.f32.mrf.mxu0
    %v233 = vadd.f32 %v173, %v232
    %v234 = vpop.f32.mrf.mxu0
    %v235 = vadd.f32 %v173, %v234
    %236 = vmatmul.bf16.gmra.mxu0 %v221
    %v237 = vpop.f32.mrf.mxu0
    %v238 = vadd.f32 %v173, %v237
    %v239 = vpop.f32.mrf.mxu0
    %v240 = vadd.f32 %v173, %v239
    %241 = vdwg.mxu0
    %242 = vmatpush.bf16.msra.mxu0 0
    %243 = vmatpush.bf16.msra.mxu0 0
    %244 = vmatpush.bf16.msra.mxu0 0
    %245 = vmatpush.bf16.msra.mxu0 0
    %246 = vmatpush.bf16.msra.mxu0 %v208
    %247 = vmatpush.bf16.msra.mxu0 %v206
    %248 = vmatpush.bf16.msra.mxu0 %v204
    %249 = vmatpush.bf16.msra.mxu0 %v202
    %250 = vmatmul.bf16.gmra.mxu0 %v218
    %v251 = vpop.f32.mrf.mxu0
    %v252 = vadd.f32 %v174, %v251
    %v253 = vpop.f32.mrf.mxu0
    %v254 = vadd.f32 %v174, %v253
    %255 = vmatmul.bf16.gmra.mxu0 %v221
    %v256 = vpop.f32.mrf.mxu0
    %v257 = vadd.f32 %v174, %v256
    %v258 = vpop.f32.mrf.mxu0
    %v259 = vadd.f32 %v174, %v258
    %260 = vdwg.mxu0
    %v261 = vtanh.pop %v233
    %v262 = vtanh.pop %v252
    %v263 = vtanh.pop %v235
    %v264 = vtanh.pop %v254
    %v265 = vtanh.pop %v238
    %v266 = vtanh.pop %v257
    %v267 = vtanh.pop %v240
    %v268 = vtanh.pop %v259
    %271 = vrot.lane.b32.xlu0 %v261, 96
    %v272 = vpop.permute.xlu0 %271
    %273 = vrot.lane.b32.xlu0 %v263, 96
    %v274 = vpop.permute.xlu0 %273
    %vm275 = vcmask 261120
    %v276 = vsel %vm275, %v261, 0
    %v278 = vsel %vm275, %v263, 0
    %v280 = vsel %vm275, %v272, 0
    %v282 = vsel %vm275, %v274, 0
    %284 = vmatpush.xpose.msra.mxu0 0.0
    %285 = vmatpush.xpose.msra.mxu0 0.0
    %286 = vmatpush.xpose.msra.mxu0 0.0
    %287 = vmatpush.xpose.msra.mxu0 0.0
    %288 = vmatpush.xpose.msra.mxu0 0.0
    %289 = vmatpush.xpose.msra.mxu0 0.0
    %290 = vmatpush.xpose.msra.mxu0 0.0
    %291 = vmatpush.xpose.msra.mxu0 0.0
    %292 = vmatpush.xpose.msra.mxu0 0.0
    %293 = vmatpush.xpose.msra.mxu0 0.0
    %294 = vmatpush.xpose.msra.mxu0 0.0
    %295 = vmatpush.xpose.msra.mxu0 0.0
    %296 = vmatpush.xpose.msra.mxu0 0.0
    %297 = vmatpush.xpose.msra.mxu0 0.0
    %298 = vmatpush.xpose.msra.mxu0 %v282
    %299 = vmatpush.xpose.msra.mxu0 %v280
    %300 = vmatmul.f32.gmra.mxu0 %v276
    %v301 = vpop.f32.mrf.mxu0
    %v302 = vadd.f32 0.0, %v301
    %303 = vmatmul.f32.gmra.mxu0 %v278
    %v304 = vpop.f32.mrf.mxu0
    %v305 = vadd.f32 0.0, %v304
    %306 = vdwg.mxu0
    %v307 = vmul.f32 %v302, 0.17677669
    %v308 = vmul.f32 %v305, 0.17677669
    %v309 = vmul.f32 %v307, 1.442695
    %v310 = vpow.pop %v309
    %v311 = vmul.f32 %v308, 1.442695
    %v312 = vpow.pop %v311
    %vm313 = vcmask 130048
    %v314 = vsel %vm313, %v310, 0.0
    %315 = vadd.xlane.f32.xlu0 %v314
    %v316 = vpop.xlane.xlu0 %315
    %v317 = vsel %vm313, %v312, 0.0
    %318 = vadd.xlane.f32.xlu0 %v317
    %v319 = vpop.xlane.xlu0 %318
    %v320 = vrcp.pop %v316
    %v321 = vrcp.pop %v319
    %v322 = vmul.f32 %v310, %v320
    %v323 = vmul.f32 %v312, %v321
    %324 = vrot.lane.b32.xlu0 %v261, 64
    %v325 = vpop.permute.xlu0 %324
    %326 = vrot.lane.b32.xlu0 %v263, 64
    %v327 = vpop.permute.xlu0 %326
    %v331 = vsel %vm313, %v322, 0
    %v334 = vsel %vm313, %v323, 0
    %336 = vmatpush.msra.mxu0 0.0
    %337 = vmatpush.msra.mxu0 0.0
    %338 = vmatpush.msra.mxu0 0.0
    %339 = vmatpush.msra.mxu0 0.0
    %340 = vmatpush.msra.mxu0 0.0
    %341 = vmatpush.msra.mxu0 0.0
    %342 = vmatpush.msra.mxu0 0.0
    %343 = vmatpush.msra.mxu0 0.0
    %344 = vmatpush.msra.mxu0 0.0
    %345 = vmatpush.msra.mxu0 0.0
    %346 = vmatpush.msra.mxu0 0.0
    %347 = vmatpush.msra.mxu0 0.0
    %348 = vmatpush.msra.mxu0 0.0
    %349 = vmatpush.msra.mxu0 0.0
    %350 = vmatpush.msra.mxu0 %v327
    %351 = vmatpush.msra.mxu0 %v325
    %352 = vmatmul.f32.gmra.mxu0 %v331
    %v353 = vpop.f32.mrf.mxu0
    %v354 = vadd.f32 0.0, %v353
    %355 = vmatmul.f32.gmra.mxu0 %v334
    %v356 = vpop.f32.mrf.mxu0
    %v357 = vadd.f32 0.0, %v356
    %358 = vdwg.mxu0
    %361 = vrot.lane.b32.xlu0 %v354, 64
    %v362 = vpop.permute.xlu0 %361
    %363 = vrot.lane.b32.xlu0 %v357, 64
    %v364 = vpop.permute.xlu0 %363
    %v367 = vadd.f32 %v261, %v362
    %v368 = vadd.f32 %v263, %v364
    %369 = vrot.lane.b32.xlu0 %v261, 32
    %v370 = vpop.permute.xlu0 %369
    %371 = vrot.lane.b32.xlu0 %v263, 32
    %v372 = vpop.permute.xlu0 %371
    %v373 = vsel %vm275, %v370, 0
    %v375 = vsel %vm275, %v372, 0
    %v378 = vsel %vm275, %v262, 0
    %v381 = vsel %vm275, %v264, 0
    %383 = vmatpush.xpose.msra.mxu0 0.0
    %384 = vmatpush.xpose.msra.mxu0 0.0
    %385 = vmatpush.xpose.msra.mxu0 0.0
    %386 = vmatpush.xpose.msra.mxu0 0.0
    %387 = vmatpush.xpose.msra.mxu0 0.0
    %388 = vmatpush.xpose.msra.mxu0 0.0
    %389 = vmatpush.xpose.msra.mxu0 0.0
    %390 = vmatpush.xpose.msra.mxu0 0.0
    %391 = vmatpush.xpose.msra.mxu0 0.0
    %392 = vmatpush.xpose.msra.mxu0 0.0
    %393 = vmatpush.xpose.msra.mxu0 0.0
    %394 = vmatpush.xpose.msra.mxu0 0.0
    %395 = vmatpush.xpose.msra.mxu0 0.0
    %396 = vmatpush.xpose.msra.mxu0 0.0
    %397 = vmatpush.xpose.msra.mxu0 %v381
    %398 = vmatpush.xpose.msra.mxu0 %v378
    %399 = vmatmul.f32.gmra.mxu0 %v373
    %v400 = vpop.f32.mrf.mxu0
    %v401 = vadd.f32 0.0, %v400
    %402 = vmatmul.f32.gmra.mxu0 %v375
    %v403 = vpop.f32.mrf.mxu0
    %v404 = vadd.f32 0.0, %v403
    %405 = vdwg.mxu0
    %v406 = vmul.f32 %v401, 0.17677669
    %v407 = vmul.f32 %v404, 0.17677669
    %v408 = vmul.f32 %v406, 1.442695
    %v409 = vpow.pop %v408
    %v410 = vmul.f32 %v407, 1.442695
    %v411 = vpow.pop %v410
    %v412 = vsel %vm313, %v409, 0.0
    %413 = vadd.xlane.f32.xlu0 %v412
    %v414 = vpop.xlane.xlu0 %413
    %v415 = vsel %vm313, %v411, 0.0
    %416 = vadd.xlane.f32.xlu0 %v415
    %v417 = vpop.xlane.xlu0 %416
    %v418 = vrcp.pop %v414
    %v419 = vrcp.pop %v417
    %v420 = vmul.f32 %v409, %v418
    %v421 = vmul.f32 %v411, %v419
    %422 = vrot.lane.b32.xlu0 %v262, 96
    %v423 = vpop.permute.xlu0 %422
    %424 = vrot.lane.b32.xlu0 %v264, 96
    %v425 = vpop.permute.xlu0 %424
    %v429 = vsel %vm313, %v420, 0
    %v432 = vsel %vm313, %v421, 0
    %434 = vmatpush.msra.mxu0 0.0
    %435 = vmatpush.msra.mxu0 0.0
    %436 = vmatpush.msra.mxu0 0.0
    %437 = vmatpush.msra.mxu0 0.0
    %438 = vmatpush.msra.mxu0 0.0
    %439 = vmatpush.msra.mxu0 0.0
    %440 = vmatpush.msra.mxu0 0.0
    %441 = vmatpush.msra.mxu0 0.0
    %442 = vmatpush.msra.mxu0 0.0
    %443 = vmatpush.msra.mxu0 0.0
    %444 = vmatpush.msra.mxu0 0.0
    %445 = vmatpush.msra.mxu0 0.0
    %446 = vmatpush.msra.mxu0 0.0
    %447 = vmatpush.msra.mxu0 0.0
    %448 = vmatpush.msra.mxu0 %v425
    %449 = vmatpush.msra.mxu0 %v423
    %450 = vmatmul.f32.gmra.mxu0 %v429
    %v451 = vpop.f32.mrf.mxu0
    %v452 = vadd.f32 0.0, %v451
    %453 = vmatmul.f32.gmra.mxu0 %v432
    %v454 = vpop.f32.mrf.mxu0
    %v455 = vadd.f32 0.0, %v454
    %456 = vdwg.mxu0
    %459 = vrot.lane.b32.xlu0 %v452, 32
    %v460 = vpop.permute.xlu0 %459
    %461 = vrot.lane.b32.xlu0 %v455, 32
    %v462 = vpop.permute.xlu0 %461
    %v465 = vadd.f32 %v262, %v460
    %v466 = vadd.f32 %v264, %v462
    %469 = vrot.lane.b32.xlu0 %v367, 64
    %v470 = vpop.permute.xlu0 %469
    %471 = vrot.lane.b32.xlu0 %v368, 64
    %v472 = vpop.permute.xlu0 %471
    %v475 = vsel %vm275, %v470, %v465
    %v476 = vsel %vm275, %v472, %v466
    %477 = vst.msk [vmem:[#allocation8] sm:$0xff] %vm65, %v475
    %478 = vst.msk [vmem:[#allocation8 + $0x8] sm:$0xff] %vm65, %v476
    %481 = vrot.lane.b32.xlu0 %v265, 96
    %v482 = vpop.permute.xlu0 %481
    %483 = vrot.lane.b32.xlu0 %v267, 96
    %v484 = vpop.permute.xlu0 %483
    %v485 = vsel %vm275, %v265, 0
    %v487 = vsel %vm275, %v267, 0
    %v489 = vsel %vm275, %v482, 0
    %v491 = vsel %vm275, %v484, 0
    %493 = vmatpush.xpose.msra.mxu0 0.0
    %494 = vmatpush.xpose.msra.mxu0 0.0
    %495 = vmatpush.xpose.msra.mxu0 0.0
    %496 = vmatpush.xpose.msra.mxu0 0.0
    %497 = vmatpush.xpose.msra.mxu0 0.0
    %498 = vmatpush.xpose.msra.mxu0 0.0
    %499 = vmatpush.xpose.msra.mxu0 0.0
    %500 = vmatpush.xpose.msra.mxu0 0.0
    %501 = vmatpush.xpose.msra.mxu0 0.0
    %502 = vmatpush.xpose.msra.mxu0 0.0
    %503 = vmatpush.xpose.msra.mxu0 0.0
    %504 = vmatpush.xpose.msra.mxu0 0.0
    %505 = vmatpush.xpose.msra.mxu0 0.0
    %506 = vmatpush.xpose.msra.mxu0 0.0
    %507 = vmatpush.xpose.msra.mxu0 %v491
    %508 = vmatpush.xpose.msra.mxu0 %v489
    %509 = vmatmul.f32.gmra.mxu0 %v485
    %v510 = vpop.f32.mrf.mxu0
    %v511 = vadd.f32 0.0, %v510
    %512 = vmatmul.f32.gmra.mxu0 %v487
    %v513 = vpop.f32.mrf.mxu0
    %v514 = vadd.f32 0.0, %v513
    %515 = vdwg.mxu0
    %v516 = vmul.f32 %v511, 0.17677669
    %v517 = vmul.f32 %v514, 0.17677669
    %v518 = vmul.f32 %v516, 1.442695
    %v519 = vpow.pop %v518
    %v520 = vmul.f32 %v517, 1.442695
    %v521 = vpow.pop %v520
    %v522 = vsel %vm313, %v519, 0.0
    %523 = vadd.xlane.f32.xlu0 %v522
    %v524 = vpop.xlane.xlu0 %523
    %v525 = vsel %vm313, %v521, 0.0
    %526 = vadd.xlane.f32.xlu0 %v525
    %v527 = vpop.xlane.xlu0 %526
    %v528 = vrcp.pop %v524
    %v529 = vrcp.pop %v527
    %v530 = vmul.f32 %v519, %v528
    %v531 = vmul.f32 %v521, %v529
    %532 = vrot.lane.b32.xlu0 %v265, 64
    %v533 = vpop.permute.xlu0 %532
    %534 = vrot.lane.b32.xlu0 %v267, 64
    %v535 = vpop.permute.xlu0 %534
    %v539 = vsel %vm313, %v530, 0
    %v542 = vsel %vm313, %v531, 0
    %544 = vmatpush.msra.mxu0 0.0
    %545 = vmatpush.msra.mxu0 0.0
    %546 = vmatpush.msra.mxu0 0.0
    %547 = vmatpush.msra.mxu0 0.0
    %548 = vmatpush.msra.mxu0 0.0
    %549 = vmatpush.msra.mxu0 0.0
    %550 = vmatpush.msra.mxu0 0.0
    %551 = vmatpush.msra.mxu0 0.0
    %552 = vmatpush.msra.mxu0 0.0
    %553 = vmatpush.msra.mxu0 0.0
    %554 = vmatpush.msra.mxu0 0.0
    %555 = vmatpush.msra.mxu0 0.0
    %556 = vmatpush.msra.mxu0 0.0
    %557 = vmatpush.msra.mxu0 0.0
    %558 = vmatpush.msra.mxu0 %v535
    %559 = vmatpush.msra.mxu0 %v533
    %560 = vmatmul.f32.gmra.mxu0 %v539
    %v561 = vpop.f32.mrf.mxu0
    %v562 = vadd.f32 0.0, %v561
    %563 = vmatmul.f32.gmra.mxu0 %v542
    %v564 = vpop.f32.mrf.mxu0
    %v565 = vadd.f32 0.0, %v564
    %566 = vdwg.mxu0
    %569 = vrot.lane.b32.xlu0 %v562, 64
    %v570 = vpop.permute.xlu0 %569
    %571 = vrot.lane.b32.xlu0 %v565, 64
    %v572 = vpop.permute.xlu0 %571
    %v575 = vadd.f32 %v265, %v570
    %v576 = vadd.f32 %v267, %v572
    %577 = vrot.lane.b32.xlu0 %v265, 32
    %v578 = vpop.permute.xlu0 %577
    %579 = vrot.lane.b32.xlu0 %v267, 32
    %v580 = vpop.permute.xlu0 %579
    %v581 = vsel %vm275, %v578, 0
    %v583 = vsel %vm275, %v580, 0
    %v586 = vsel %vm275, %v266, 0
    %v589 = vsel %vm275, %v268, 0
    %591 = vmatpush.xpose.msra.mxu0 0.0
    %592 = vmatpush.xpose.msra.mxu0 0.0
    %593 = vmatpush.xpose.msra.mxu0 0.0
    %594 = vmatpush.xpose.msra.mxu0 0.0
    %595 = vmatpush.xpose.msra.mxu0 0.0
    %596 = vmatpush.xpose.msra.mxu0 0.0
    %597 = vmatpush.xpose.msra.mxu0 0.0
    %598 = vmatpush.xpose.msra.mxu0 0.0
    %599 = vmatpush.xpose.msra.mxu0 0.0
    %600 = vmatpush.xpose.msra.mxu0 0.0
    %601 = vmatpush.xpose.msra.mxu0 0.0
    %602 = vmatpush.xpose.msra.mxu0 0.0
    %603 = vmatpush.xpose.msra.mxu0 0.0
    %604 = vmatpush.xpose.msra.mxu0 0.0
    %605 = vmatpush.xpose.msra.mxu0 %v589
    %606 = vmatpush.xpose.msra.mxu0 %v586
    %607 = vmatmul.f32.gmra.mxu0 %v581
    %v608 = vpop.f32.mrf.mxu0
    %v609 = vadd.f32 0.0, %v608
    %610 = vmatmul.f32.gmra.mxu0 %v583
    %v611 = vpop.f32.mrf.mxu0
    %v612 = vadd.f32 0.0, %v611
    %613 = vdwg.mxu0
    %v614 = vmul.f32 %v609, 0.17677669
    %v615 = vmul.f32 %v612, 0.17677669
    %v616 = vmul.f32 %v614, 1.442695
    %v617 = vpow.pop %v616
    %v618 = vmul.f32 %v615, 1.442695
    %v619 = vpow.pop %v618
    %v620 = vsel %vm313, %v617, 0.0
    %621 = vadd.xlane.f32.xlu0 %v620
    %v622 = vpop.xlane.xlu0 %621
    %v623 = vsel %vm313, %v619, 0.0
    %624 = vadd.xlane.f32.xlu0 %v623
    %v625 = vpop.xlane.xlu0 %624
    %v626 = vrcp.pop %v622
    %v627 = vrcp.pop %v625
    %v628 = vmul.f32 %v617, %v626
    %v629 = vmul.f32 %v619, %v627
    %630 = vrot.lane.b32.xlu0 %v266, 96
    %v631 = vpop.permute.xlu0 %630
    %632 = vrot.lane.b32.xlu0 %v268, 96
    %v633 = vpop.permute.xlu0 %632
    %v637 = vsel %vm313, %v628, 0
    %v640 = vsel %vm313, %v629, 0
    %642 = vmatpush.msra.mxu0 0.0
    %643 = vmatpush.msra.mxu0 0.0
    %644 = vmatpush.msra.mxu0 0.0
    %645 = vmatpush.msra.mxu0 0.0
    %646 = vmatpush.msra.mxu0 0.0
    %647 = vmatpush.msra.mxu0 0.0
    %648 = vmatpush.msra.mxu0 0.0
    %649 = vmatpush.msra.mxu0 0.0
    %650 = vmatpush.msra.mxu0 0.0
    %651 = vmatpush.msra.mxu0 0.0
    %652 = vmatpush.msra.mxu0 0.0
    %653 = vmatpush.msra.mxu0 0.0
    %654 = vmatpush.msra.mxu0 0.0
    %655 = vmatpush.msra.mxu0 0.0
    %656 = vmatpush.msra.mxu0 %v633
    %657 = vmatpush.msra.mxu0 %v631
    %658 = vmatmul.f32.gmra.mxu0 %v637
    %v659 = vpop.f32.mrf.mxu0
    %v660 = vadd.f32 0.0, %v659
    %661 = vmatmul.f32.gmra.mxu0 %v640
    %v662 = vpop.f32.mrf.mxu0
    %v663 = vadd.f32 0.0, %v662
    %664 = vdwg.mxu0
    %667 = vrot.lane.b32.xlu0 %v660, 32
    %v668 = vpop.permute.xlu0 %667
    %669 = vrot.lane.b32.xlu0 %v663, 32
    %v670 = vpop.permute.xlu0 %669
    %v673 = vadd.f32 %v266, %v668
    %v674 = vadd.f32 %v268, %v670
    %677 = vrot.lane.b32.xlu0 %v575, 64
    %v678 = vpop.permute.xlu0 %677
    %679 = vrot.lane.b32.xlu0 %v576, 64
    %v680 = vpop.permute.xlu0 %679
    %v683 = vsel %vm275, %v678, %v673
    %v684 = vsel %vm275, %v680, %v674
    %685 = vst.msk [vmem:[#allocation8 + $0x10] sm:$0xff] %vm65, %v683
    %686 = vst.msk [vmem:[#allocation8 + $0x18] sm:$0xff] %vm65, %v684
    // Predicated region
    $region26: #{tpu_custom_call.1} parent=1 // pred_check
      _
    $region27: #{tpu_custom_call.1} parent=1 // pred_check_branch
      %688 = sbr.rel (0) target = $region29
    $region28: #{tpu_custom_call.1} parent=1 // pred_region
      %690 = vsyncadd [#allocation4], 0
      %s691 = sshll.u32 [#allocation8], 4
      %s692 = int_to_ptr.vmem [resolvable:$true] %s691
      %s693 = sshll.u32 %s3, 4
      %s694 = int_to_ptr.hbm [resolvable:$true] %s693
      %699 = dma.vmem_to_hbm [thread:$0]  %s692, 512, %s694, [#allocation4], 128, 128, 8
    $region29: #{tpu_custom_call.1} parent=1 // pred_fallthru
      _
    // Predicated region
    $region30: #{tpu_custom_call.1} parent=1 // pred_check
      _
    $region31: #{tpu_custom_call.1} parent=1 // pred_check_branch
      %701 = sbr.rel (0) target = $region33
    $region32: #{tpu_custom_call.1} parent=1 // pred_region
      %703 = dma.done [#allocation4], 512
    $region33: #{tpu_custom_call.1} parent=1 // pred_fallthru
      _
    %704 = vsyncpa [#allocation3], 1
    %705 = vsyncpa [#allocation6], 1
    %706 = vsyncpa [#allocation4], 1

</llo_original>
